<compile_context>
chip_gen: v7x
topology: tpu7x:2x2x1
jax: 0.10.0
libtpu: 0.0.40
codegen_flags: <defaults>
</compile_context>

<pallas_src>
import math

import jax
import jax.numpy as jnp
from jax.experimental import pallas as pl
from jax.experimental.pallas import tpu as pltpu


# ----------------------------------------------------------------------------
# Kernel body
# ----------------------------------------------------------------------------
def _make_kernel(variant, residual, single_k):
    """Argument layout (statically known):
       scalars(SMEM), adj, input_red, feature, w1, [w2 if variant],
       [input_res if residual], out, [acc scratch if not single_k]."""

    def kernel(*refs):
        scal_ref, adj_ref, inp_ref, feat_ref, w1_ref = refs[:5]
        pos = 5
        w2_ref = None
        res_ref = None
        if variant:
            w2_ref = refs[pos]
            pos += 1
        if residual:
            res_ref = refs[pos]
            pos += 1
        out_ref = refs[pos]
        pos += 1

        alpha = scal_ref[0]          # f32 scalar from SMEM
        beta = scal_ref[1]           # f32 scalar from SMEM

        def epilogue(hi):
            feat = feat_ref[...].astype(jnp.float32)
            w1 = w1_ref[...]
            if variant:
                # support = cat([hi, feature], 1);  support @ W == hi@W[:F] + feat@W[F:]
                sup_w = (jnp.dot(hi.astype(w1.dtype), w1,
                                 preferred_element_type=jnp.float32)
                         + jnp.dot(feat.astype(w1.dtype), w2_ref[...],
                                   preferred_element_type=jnp.float32))
                out = beta * sup_w + (1.0 - beta) * ((1.0 - alpha) * hi + alpha * feat)
            else:
                irc = (1.0 - alpha) * hi + alpha * feat
                out = ((1.0 - beta) * irc
                       + beta * jnp.dot(irc.astype(w1.dtype), w1,
                                        preferred_element_type=jnp.float32))
            if residual:
                out = 0.5 * out + 0.5 * res_ref[...].astype(jnp.float32)
            out_ref[...] = out.astype(out_ref.dtype)

        if single_k:
            # Whole reduction in one MXU pass: adj row-block [tm, N] @ input [N, F].
            hi = jnp.dot(adj_ref[...], inp_ref[...],
                         preferred_element_type=jnp.float32)
            epilogue(hi)
        else:
            acc_ref = refs[pos]
            k = pl.program_id(1)

            @pl.when(k == 0)
            def _():
                acc_ref[...] = jnp.zeros_like(acc_ref)

            acc_ref[...] += jnp.dot(adj_ref[...], inp_ref[...],
                                    preferred_element_type=jnp.float32)

            @pl.when(k == pl.num_programs(1) - 1)
            def _():
                epilogue(acc_ref[...])

    return kernel


# ----------------------------------------------------------------------------
# Generation-aware tiling helpers
# ----------------------------------------------------------------------------
def _hw_vmem_bytes():
    try:
        info = pltpu.get_tpu_info()
        v = getattr(info, "vmem_capacity_bytes", None)
        if v:
            return int(v)
    except Exception:
        pass
    return 64 * 1024 * 1024  # conservative: v7x per-TensorCore VMEM


def _pick_tm(N):
    """N is a multiple of 128. Prefer an EVEN number of node tiles (balanced
    megacore split on v7x), larger tiles first."""
    for cand in (512, 256, 128):
        if N % cand == 0 and (N // cand) >= 2 and (N // cand) % 2 == 0:
            return cand
    for cand in (512, 256, 128):
        if N % cand == 0 and (N // cand) >= 2:
            return cand
    return min(N, 512)  # tiny graph: single node tile (N itself, multiple of 128)


def _tk_candidates(N):
    """Valid reduction-tile sizes: multiples of 128 dividing N, largest first."""
    return sorted((d for d in range(128, N + 1, 128) if N % d == 0), reverse=True)


def _vmem_bill(tm, tk, F, F_out, variant, residual, single_k, out_bytes):
    """Bytes of VMEM for double-buffered inputs/outputs + scratch."""
    bill = 2 * tm * tk * 2                      # adj tile (bf16)
    bill += 2 * tk * F * 2                      # input, reduction rows (bf16)
    bill += 2 * tm * F * 4                      # feature, output rows (f32)
    bill += 2 * F * F_out * 2                   # weight part 1 (bf16)
    if variant:
        bill += 2 * F * F_out * 2               # weight part 2 (bf16)
    if residual:
        bill += 2 * tm * F * 4                  # residual input rows
    bill += 2 * tm * F_out * out_bytes          # output tile
    if not single_k:
        bill += tm * F * 4                      # f32 accumulator scratch
    return bill


# ----------------------------------------------------------------------------
# Layer wrapper
# ----------------------------------------------------------------------------
class GraphConvolution:
    """JAX/Pallas port of GCNII's GraphConvolution layer (forward only).

    Pass `adj` (and optionally `input`) already cast to bfloat16 to avoid a
    per-call cast pass over the N^2 adjacency -- the cast can be amortized
    once per graph across all GCNII layers.
    """

    def __init__(self, in_features, out_features, residual=False, variant=False,
                 key=None):
        self.variant = variant
        self.in_features = 2 * in_features if variant else in_features
        self.out_features = out_features
        self.residual = residual
        if key is None:
            key = jax.random.PRNGKey(0)
        stdv = 1.0 / math.sqrt(out_features)
        # Matches torch uniform_(-stdv, stdv) init (deterministic synthetic weights).
        self.weight = jax.random.uniform(
            key, (self.in_features, self.out_features),
            dtype=jnp.float32, minval=-stdv, maxval=stdv)
        # Pre-cast weights once (bf16 MXU operands, f32 accumulation in-kernel).
        F_half = in_features
        if variant:
            self._w1_bf = self.weight[:F_half, :].astype(jnp.bfloat16)  # multiplies hi
            self._w2_bf = self.weight[F_half:, :].astype(jnp.bfloat16)  # multiplies feature
        else:
            self._w1_bf = self.weight.astype(jnp.bfloat16)
            self._w2_bf = None

    def __call__(self, feature, input, adj, alpha, lamda, l, *,
                 tm=None, tk=None, out_dtype=jnp.float32):
        beta = math.log(lamda / l + 1.0)
        N, F = input.shape
        F_out = self.out_features
        assert adj.shape == (N, N)
        assert feature.shape == (N, F)

        # --- zero-pad node count to a multiple of 128 (exact for adj @ input) ---
        Np = ((N + 127) // 128) * 128
        if Np != N:
            pad = Np - N
            adj = jnp.pad(adj, ((0, pad), (0, pad)))
            input = jnp.pad(input, ((0, pad), (0, 0)))
            feature = jnp.pad(feature, ((0, pad), (0, 0)))

        # --- cheap dtype handling: only cast when caller did not pre-cast ---
        adj_bf = adj if adj.dtype == jnp.bfloat16 else adj.astype(jnp.bfloat16)
        inp_bf = input if input.dtype == jnp.bfloat16 else input.astype(jnp.bfloat16)
        w1 = self._w1_bf
        w2 = self._w2_bf
        out_bytes = jnp.dtype(out_dtype).itemsize

        # --- generation-aware tile / VMEM budget selection ---
        hw_vmem = _hw_vmem_bytes()
        per_buffer_budget = max(2 * 1024 * 1024, min(16 * 1024 * 1024, hw_vmem // 10))
        cap = 40 * 1024 * 1024 if hw_vmem <= 64 * 1024 * 1024 else 100 * 1024 * 1024

        cands = _tk_candidates(Np)
        if tm is None:
            tm = _pick_tm(Np)
        if tk is None:
            tk = next((c for c in cands if tm * c * 2 <= per_buffer_budget), 128)
        assert Np % tm == 0 and Np % tk == 0, "tm/tk must divide the padded node count"

        # Shrink tk (not tm) if the total VMEM bill exceeds the per-generation cap.
        while True:
            single_k = (tk == Np)
            bill = _vmem_bill(tm, tk, F, F_out, self.variant, self.residual,
                              single_k, out_bytes)
            limit_needed = bill + bill // 4  # +25% margin
            if limit_needed <= cap or tk <= 128:
                break
            idx = cands.index(tk)
            if idx + 1 >= len(cands):
                break
            tk = cands[idx + 1]

        kernel = _make_kernel(self.variant, self.residual, single_k)

        if single_k:
            grid = (Np // tm,)
            im_adj = lambda i: (i, 0)
            im_inp = lambda i: (0, 0)
            im_row = lambda i: (i, 0)
            im_w = lambda i: (0, 0)
            adj_block = (tm, Np)
            inp_block = (Np, F)
            scratch = []
            dims = ("parallel",)
        else:
            grid = (Np // tm, Np // tk)
            im_adj = lambda i, k: (i, k)
            im_inp = lambda i, k: (k, 0)
            im_row = lambda i, k: (i, 0)
            im_w = lambda i, k: (0, 0)
            adj_block = (tm, tk)
            inp_block = (tk, F)
            scratch = [pltpu.VMEM((tm, F), jnp.float32)]
            dims = ("parallel", "arbitrary")

        # alpha/beta as runtime SMEM scalars -> one compiled kernel for all layers.
        scalars = jnp.array([alpha, beta], dtype=jnp.float32)

        in_specs = [
            pl.BlockSpec(memory_space=pltpu.MemorySpace.SMEM),  # (alpha, beta)
            pl.BlockSpec(adj_block, im_adj),                    # adj tile (bf16)
            pl.BlockSpec(inp_block, im_inp),                    # input, reduction rows (bf16)
            pl.BlockSpec((tm, F), im_row),                      # feature, output rows
            pl.BlockSpec((F, F_out), im_w),                     # weight part 1 (bf16)
        ]
        args = [scalars, adj_bf, inp_bf, feature, w1]
        if self.variant:
            in_specs.append(pl.BlockSpec((F, F_out), im_w))     # weight part 2 (bf16)
            args.append(w2)
        if self.residual:
            in_specs.append(pl.BlockSpec((tm, F), im_row))      # residual input rows
            args.append(input)

        cp_kwargs = dict(dimension_semantics=dims)
        if limit_needed > 16 * 1024 * 1024:   # smallest default scoped limit (v5e)
            cp_kwargs["vmem_limit_bytes"] = int(min(limit_needed, cap))

        out = pl.pallas_call(
            kernel,
            out_shape=jax.ShapeDtypeStruct((Np, F_out), out_dtype),
            grid_spec=pltpu.PrefetchScalarGridSpec(
                num_scalar_prefetch=0,
                grid=grid,
                in_specs=in_specs,
                out_specs=pl.BlockSpec((tm, F_out), im_row),
                scratch_shapes=scratch,
            ),
            compiler_params=pltpu.CompilerParams(**cp_kwargs),
        )(*args)

        if Np != N:
            out = out[:N]
        return out


# ----------------------------------------------------------------------------
# Pure-JAX f32 reference mirroring the PyTorch forward
# ----------------------------------------------------------------------------
def _reference(feature, input, adj, weight, alpha, lamda, l, variant, residual):
    beta = math.log(lamda / l + 1.0)
    if variant:
        hi = adj @ input
        support = jnp.concatenate([hi, feature], axis=1)
        out = beta * (support @ weight) + (1 - beta) * ((1 - alpha) * hi + alpha * feature)
    else:
        irc = (1 - alpha) * (adj @ input) + alpha * feature
        out = (1 - beta) * irc + beta * (irc @ weight)
    if residual:
        out = 0.5 * out + 0.5 * input
    return out


if __name__ == "__main__":
    N, F = 256, 32            # small synthetic graph: 256 nodes, 32-dim hidden
    alpha, lamda = 0.1, 0.5

    key = jax.random.PRNGKey(0)
    k_adj, k_feat, k_inp, k_w1, k_w2 = jax.random.split(key, 5)

    # Dense "normalized adjacency"-like matrix and node features.
    adj = jax.random.uniform(k_adj, (N, N), dtype=jnp.float32) / N
    feature = jax.random.normal(k_feat, (N, F), dtype=jnp.float32)
    input_x = jax.random.normal(k_inp, (N, F), dtype=jnp.float32)

    # Cast the adjacency to bf16 ONCE (amortized across every GCNII layer/call);
    # the kernel only ever reads the bf16 copy.
    adj_bf = adj.astype(jnp.bfloat16)

    # bf16 adj/input/weights with f32 accumulation -> relaxed tolerance.
    TOL = dict(atol=5e-3, rtol=5e-3)

    # 1) plain GCNII conv (variant=False, residual=False), fused single-pass path.
    layer = GraphConvolution(F, F, residual=False, variant=False, key=k_w1)
    out = jax.block_until_ready(layer(feature, input_x, adj_bf, alpha, lamda, 1))
    ref = _reference(feature, input_x, adj, layer.weight, alpha, lamda, 1,
                     variant=False, residual=False)
    assert out.shape == (N, F)
    assert jnp.allclose(out, ref, **TOL), "mismatch vs reference (plain)"

    # 2) same layer at a different depth l (beta is a runtime SMEM scalar, so the
    #    same compiled kernel is reused).
    out_l2 = jax.block_until_ready(layer(feature, input_x, adj_bf, alpha, lamda, 2))
    ref_l2 = _reference(feature, input_x, adj, layer.weight, alpha, lamda, 2,
                        variant=False, residual=False)
    assert jnp.allclose(out_l2, ref_l2, **TOL), "mismatch vs reference (depth 2)"

    # 3) forced 2D grid (k-reduction) path.
    out2 = jax.block_until_ready(
        layer(feature, input_x, adj_bf, alpha, lamda, 1, tm=128, tk=128))
    assert jnp.allclose(out2, ref, **TOL), "mismatch vs reference (k-reduction)"

    # 4) variant + residual path.
    layer_v = GraphConvolution(F, F, residual=True, variant=True, key=k_w2)
    out_v = jax.block_until_ready(layer_v(feature, input_x, adj_bf, alpha, lamda, 1))
    ref_v = _reference(feature, input_x, adj, layer_v.weight, alpha, lamda, 1,
                       variant=True, residual=True)
    assert jnp.allclose(out_v, ref_v, **TOL), "mismatch vs reference (variant+residual)"

    # 5) non-multiple-of-128 node count exercises the zero-padding path.
    N_s = 200
    adj_s = jax.random.uniform(k_adj, (N_s, N_s), dtype=jnp.float32) / N_s
    feat_s = jax.random.normal(k_feat, (N_s, F), dtype=jnp.float32)
    inp_s = jax.random.normal(k_inp, (N_s, F), dtype=jnp.float32)
    out_s = jax.block_until_ready(layer(feat_s, inp_s, adj_s, alpha, lamda, 1))
    ref_s = _reference(feat_s, inp_s, adj_s, layer.weight, alpha, lamda, 1,
                       variant=False, residual=False)
    assert out_s.shape == (N_s, F)
    assert jnp.allclose(out_s, ref_s, **TOL), "mismatch vs reference (padded N)"

    print("KERNEL_OK")
</pallas_src>

<mosaic_0001>
module attributes {stable_mosaic.version = 11 : i64} {
  func.func @kernel(%arg0: i32, %arg1: memref<2xf32, #tpu.memory_space<smem>>, %arg2: memref<128x256xbf16, #tpu.memory_space<vmem>>, %arg3: memref<256x32xbf16, #tpu.memory_space<vmem>>, %arg4: memref<128x32xf32, #tpu.memory_space<vmem>>, %arg5: memref<32x32xbf16, #tpu.memory_space<vmem>>, %arg6: memref<128x32xf32, #tpu.memory_space<vmem>>) attributes {dimension_semantics = [#tpu.dimension_semantics<parallel>], iteration_bounds = array<i64: 2>, scalar_prefetch = 0 : i64, scratch_operands = 0 : i64, tpu.core_type = #tpu.core_type<tc>, window_params = [{transform_indices = @transform_0, window_bounds = array<i64: 2>}, {transform_indices = @transform_1, window_bounds = array<i64: 128, 256>}, {pipeline_mode = #tpu.pipeline_mode<synchronous>, transform_indices = @transform_2, window_bounds = array<i64: 256, 32>}, {transform_indices = @transform_3, window_bounds = array<i64: 128, 32>}, {pipeline_mode = #tpu.pipeline_mode<synchronous>, transform_indices = @transform_4, window_bounds = array<i64: 32, 32>}, {transform_indices = @transform_5, window_bounds = array<i64: 128, 32>}]} {
    %c0 = arith.constant 0 : index
    %0 = memref.load %arg1[%c0] : memref<2xf32, #tpu.memory_space<smem>>
    %c1 = arith.constant 1 : index
    %1 = memref.load %arg1[%c1] : memref<2xf32, #tpu.memory_space<smem>>
    %c0_0 = arith.constant 0 : index
    %c0_1 = arith.constant 0 : index
    %2 = vector.load %arg2[%c0_0, %c0_1] : memref<128x256xbf16, #tpu.memory_space<vmem>>, vector<128x256xbf16>
    %c0_2 = arith.constant 0 : index
    %c0_3 = arith.constant 0 : index
    %3 = vector.load %arg3[%c0_2, %c0_3] : memref<256x32xbf16, #tpu.memory_space<vmem>>, vector<256x32xbf16>
    %cst = arith.constant dense<0.000000e+00> : vector<128x32xf32>
    %4 = tpu.matmul %2, %3, %cst {dimension_numbers = #tpu.dot_dimension_numbers<[1], [0], [0], [1], [0, 0, 1, 1], [], []>} : vector<128x256xbf16>, vector<256x32xbf16>, vector<128x32xf32> -> vector<128x32xf32>
    %c0_4 = arith.constant 0 : index
    %c0_5 = arith.constant 0 : index
    %5 = vector.load %arg4[%c0_4, %c0_5] : memref<128x32xf32, #tpu.memory_space<vmem>>, vector<128x32xf32>
    %c0_6 = arith.constant 0 : index
    %c0_7 = arith.constant 0 : index
    %6 = vector.load %arg5[%c0_6, %c0_7] : memref<32x32xbf16, #tpu.memory_space<vmem>>, vector<32x32xbf16>
    %cst_8 = arith.constant 1.000000e+00 : f32
    %7 = arith.subf %cst_8, %0 : f32
    %8 = vector.broadcast %7 : f32 to vector<128x32xf32>
    %9 = arith.mulf %8, %4 : vector<128x32xf32>
    %10 = vector.broadcast %0 : f32 to vector<128x32xf32>
    %11 = arith.mulf %10, %5 : vector<128x32xf32>
    %12 = arith.addf %9, %11 : vector<128x32xf32>
    %cst_9 = arith.constant 1.000000e+00 : f32
    %13 = arith.subf %cst_9, %1 : f32
    %14 = vector.broadcast %13 : f32 to vector<128x32xf32>
    %15 = arith.mulf %14, %12 : vector<128x32xf32>
    %16 = arith.truncf %12 : vector<128x32xf32> to vector<128x32xbf16>
    %cst_10 = arith.constant dense<0.000000e+00> : vector<128x32xf32>
    %17 = tpu.matmul %16, %6, %cst_10 {dimension_numbers = #tpu.dot_dimension_numbers<[1], [0], [0], [1], [0, 0, 1, 1], [], []>} : vector<128x32xbf16>, vector<32x32xbf16>, vector<128x32xf32> -> vector<128x32xf32>
    %18 = vector.broadcast %1 : f32 to vector<128x32xf32>
    %19 = arith.mulf %18, %17 : vector<128x32xf32>
    %20 = arith.addf %15, %19 : vector<128x32xf32>
    %c0_11 = arith.constant 0 : index
    %c0_12 = arith.constant 0 : index
    %21 = vector.load %arg6[%c0_11, %c0_12] : memref<128x32xf32, #tpu.memory_space<vmem>>, vector<128x32xf32>
    tpu.vector_store %arg6[%c0_11, %c0_12], %20 {strides = array<i32>} : memref<128x32xf32, #tpu.memory_space<vmem>>, vector<128x32xf32>,
    return
  }
  func.func @transform_0(%arg0: i32) -> i32 {
    %c0_i32 = arith.constant 0 : i32
    %c0_i32_0 = arith.constant 0 : i32
    return %c0_i32 : i32
  }
  func.func @transform_1(%arg0: i32) -> (i32, i32) {
    %c0_i32 = arith.constant 0 : i32
    %c0_i32_0 = arith.constant 0 : i32
    return %arg0, %c0_i32 : i32, i32
  }
  func.func @transform_2(%arg0: i32) -> (i32, i32) {
    %c0_i32 = arith.constant 0 : i32
    %c0_i32_0 = arith.constant 0 : i32
    %c0_i32_1 = arith.constant 0 : i32
    return %c0_i32, %c0_i32_0 : i32, i32
  }
  func.func @transform_3(%arg0: i32) -> (i32, i32) {
    %c0_i32 = arith.constant 0 : i32
    %c0_i32_0 = arith.constant 0 : i32
    return %arg0, %c0_i32 : i32, i32
  }
  func.func @transform_4(%arg0: i32) -> (i32, i32) {
    %c0_i32 = arith.constant 0 : i32
    %c0_i32_0 = arith.constant 0 : i32
    %c0_i32_1 = arith.constant 0 : i32
    return %c0_i32, %c0_i32_0 : i32, i32
  }
  func.func @transform_5(%arg0: i32) -> (i32, i32) {
    %c0_i32 = arith.constant 0 : i32
    %c0_i32_0 = arith.constant 0 : i32
    return %arg0, %c0_i32 : i32, i32
  }
}

</mosaic_0001>

<llo_original>
// kernel: tpu_custom_call.1
$region0: #{tpu_custom_call.1}
  #allocation0 [shape = 'u32[]', space=smem, size = 0x4, offset = 0x4, fixed_abs, tag = 'smem constant byte address 0x4 - core index']
  #allocation1 [shape = 'u32[144,128]{1,0:T(1,128)}', space=vmem, size = 0x12000, scoped, tag = 'internal scratch']
  %s0 = inlined_call_operand.vmem [shape: f32[2], index: 0, kind: input, shape index: {}]
  %s1 = inlined_call_operand.vmem [shape: bf16[256,256], index: 1, kind: input, shape index: {}]
  %s2 = inlined_call_operand.vmem [shape: bf16[256,32], index: 2, kind: input, shape index: {}]
  %s3 = inlined_call_operand.vmem [shape: f32[256,32], index: 3, kind: input, shape index: {}]
  %s4 = inlined_call_operand.vmem [shape: bf16[32,32], index: 4, kind: input, shape index: {}]
  %s5 = inlined_call_operand.vmem [shape: f32[256,32], index: 5, kind: output, shape index: {}]
  %s6 = sld [smem:[#allocation0]]
  $region57: #{tpu_custom_call.1} parent=0
    _
  %s8 = ssub.s32 1, %s6
  %s9 = scalar_select 0, %s8, %s6
  $region1: #{tpu_custom_call.1} parent=0
    #allocation2 [shape = 'u8[512]{0}', space=smem, size = 0x200, scoped, tag = 'input window, operand 0, single buffered']
    #allocation3 [shape = 's32[2]{0}', space=sflag, size = 0x8, scoped, tag = 'scoped memory for tpu_custom_call.1']
    %10 = vsyncpa [#allocation3], 0
    loop: start=0, step=1, limit=4
    $region2: #{tpu_custom_call.1} parent=1 // loop_pre_header
      _
    $region3: #{tpu_custom_call.1} parent=1 // loop_header
      %s12 = sphi 0, %s16
      %p13 = scmp.ge.s32.totalorder %s12, 4
      %s20 = sphi 0, %s20
      %s22 = sphi 0, %s20
      %s23 = sphi 0, %s22
      %s37 = sphi 0, %s23
      %s43 = sphi 0, %s45
      %s46 = sphi 0, %s43
      %s47 = sphi 0, %s46
      %s63 = sphi 0, %s47
      %s67 = sphi 0, %s67
      %s69 = sphi 0, %s67
      %s70 = sphi 0, %s69
      %s84 = sphi 0, %s70
      %s90 = sphi 0, %s92
      %s93 = sphi 0, %s90
      %s94 = sphi 0, %s93
      %s110 = sphi 0, %s94
      %s114 = sphi 0, %s114
      %s116 = sphi 0, %s114
      %s117 = sphi 0, %s116
      %s131 = sphi 0, %s117
      %s137 = sphi 0, %s139
      %s140 = sphi 0, %s137
      %s141 = sphi 0, %s140
      %s157 = sphi 0, %s141
    $region4: #{tpu_custom_call.1} parent=1 // loop_header_branch
      %15 = sbr.rel (%p13) target = $region8
    $region5: #{tpu_custom_call.1} parent=1 // loop_body
      %s17 = ssub.s32 %s12, 1
      %s18 = ssub.s32 %s12, 2
      %s19 = sadd.s32 %s12, 1
      %s21 = sadd.s32 %s20, 1
      %p24 = scmp.eq.s32.totalorder %s12, 1
      %p25 = scmp.ne.s32.totalorder %s20, %s22
      %p26 = scmp.eq.s32.totalorder %s12, 0
      %p27 = por %p25, %p26
      %p28 = scmp.ne.s32.totalorder %s20, %s22
      %p29 = scmp.eq.s32.totalorder %s17, 1
      %p30 = por %p28, %p29
      %p31 = scmp.ne.s32.totalorder %s22, %s23
      %p32 = scmp.eq.s32.totalorder %s17, 0
      %p33 = por %p31, %p32
      %p34 = scmp.ne.s32.totalorder %s22, %s23
      %p35 = scmp.eq.s32.totalorder %s18, 1
      %p36 = por %p34, %p35
      %p38 = scmp.ne.s32.totalorder %s23, %s37
      %p39 = scmp.eq.s32.totalorder %s18, 0
      %p40 = por %p38, %p39
      %s41 = ssub.s32 %s12, %s19
      %p42 = scmp.eq.s32.totalorder %s41, 0
      %s44 = sadd.s32 %s43, 1
      %s45 = scalar_select %p42, %s43, %s44
      %p48 = pneg %p42
      %p49 = scmp.eq.s32.totalorder %s12, 1
      %p50 = por %p48, %p49
      %p51 = scmp.ne.s32.totalorder %s43, %s46
      %p52 = scmp.eq.s32.totalorder %s12, 0
      %p53 = por %p51, %p52
      %p54 = scmp.ne.s32.totalorder %s43, %s46
      %p55 = scmp.eq.s32.totalorder %s17, 1
      %p56 = por %p54, %p55
      %p57 = scmp.ne.s32.totalorder %s46, %s47
      %p58 = scmp.eq.s32.totalorder %s17, 0
      %p59 = por %p57, %p58
      %p60 = scmp.ne.s32.totalorder %s46, %s47
      %p61 = scmp.eq.s32.totalorder %s18, 1
      %p62 = por %p60, %p61
      %p64 = scmp.ne.s32.totalorder %s47, %s63
      %p65 = scmp.eq.s32.totalorder %s18, 0
      %p66 = por %p64, %p65
      %s68 = sadd.s32 %s67, 1
      %p71 = scmp.eq.s32.totalorder %s12, 1
      %p72 = scmp.ne.s32.totalorder %s67, %s69
      %p73 = scmp.eq.s32.totalorder %s12, 0
      %p74 = por %p72, %p73
      %p75 = scmp.ne.s32.totalorder %s67, %s69
      %p76 = scmp.eq.s32.totalorder %s17, 1
      %p77 = por %p75, %p76
      %p78 = scmp.ne.s32.totalorder %s69, %s70
      %p79 = scmp.eq.s32.totalorder %s17, 0
      %p80 = por %p78, %p79
      %p81 = scmp.ne.s32.totalorder %s69, %s70
      %p82 = scmp.eq.s32.totalorder %s18, 1
      %p83 = por %p81, %p82
      %p85 = scmp.ne.s32.totalorder %s70, %s84
      %p86 = scmp.eq.s32.totalorder %s18, 0
      %p87 = por %p85, %p86
      %s88 = ssub.s32 %s12, %s19
      %p89 = scmp.eq.s32.totalorder %s88, 0
      %s91 = sadd.s32 %s90, 1
      %s92 = scalar_select %p89, %s90, %s91
      %p95 = pneg %p89
      %p96 = scmp.eq.s32.totalorder %s12, 1
      %p97 = por %p95, %p96
      %p98 = scmp.ne.s32.totalorder %s90, %s93
      %p99 = scmp.eq.s32.totalorder %s12, 0
      %p100 = por %p98, %p99
      %p101 = scmp.ne.s32.totalorder %s90, %s93
      %p102 = scmp.eq.s32.totalorder %s17, 1
      %p103 = por %p101, %p102
      %p104 = scmp.ne.s32.totalorder %s93, %s94
      %p105 = scmp.eq.s32.totalorder %s17, 0
      %p106 = por %p104, %p105
      %p107 = scmp.ne.s32.totalorder %s93, %s94
      %p108 = scmp.eq.s32.totalorder %s18, 1
      %p109 = por %p107, %p108
      %p111 = scmp.ne.s32.totalorder %s94, %s110
      %p112 = scmp.eq.s32.totalorder %s18, 0
      %p113 = por %p111, %p112
      %s115 = sadd.s32 %s114, 1
      %p118 = scmp.eq.s32.totalorder %s12, 1
      %p119 = scmp.ne.s32.totalorder %s114, %s116
      %p120 = scmp.eq.s32.totalorder %s12, 0
      %p121 = por %p119, %p120
      %p122 = scmp.ne.s32.totalorder %s114, %s116
      %p123 = scmp.eq.s32.totalorder %s17, 1
      %p124 = por %p122, %p123
      %p125 = scmp.ne.s32.totalorder %s116, %s117
      %p126 = scmp.eq.s32.totalorder %s17, 0
      %p127 = por %p125, %p126
      %p128 = scmp.ne.s32.totalorder %s116, %s117
      %p129 = scmp.eq.s32.totalorder %s18, 1
      %p130 = por %p128, %p129
      %p132 = scmp.ne.s32.totalorder %s117, %s131
      %p133 = scmp.eq.s32.totalorder %s18, 0
      %p134 = por %p132, %p133
      %s135 = ssub.s32 %s12, %s19
      %p136 = scmp.eq.s32.totalorder %s135, 0
      %s138 = sadd.s32 %s137, 1
      %s139 = scalar_select %p136, %s137, %s138
      %p142 = pneg %p136
      %p143 = scmp.eq.s32.totalorder %s12, 1
      %p144 = por %p142, %p143
      %p145 = scmp.ne.s32.totalorder %s137, %s140
      %p146 = scmp.eq.s32.totalorder %s12, 0
      %p147 = por %p145, %p146
      %p148 = scmp.ne.s32.totalorder %s137, %s140
      %p149 = scmp.eq.s32.totalorder %s17, 1
      %p150 = por %p148, %p149
      %p151 = scmp.ne.s32.totalorder %s140, %s141
      %p152 = scmp.eq.s32.totalorder %s17, 0
      %p153 = por %p151, %p152
      %p154 = scmp.ne.s32.totalorder %s140, %s141
      %p155 = scmp.eq.s32.totalorder %s18, 1
      %p156 = por %p154, %p155
      %p158 = scmp.ne.s32.totalorder %s141, %s157
      %p159 = scmp.eq.s32.totalorder %s18, 0
      %p160 = por %p158, %p159
      %p161 = scmp.le.s32.totalorder 1, %s12
      %p162 = scmp.lt.s32.totalorder %s12, 3
      %p163 = pnand %p161, %p162
      %p164 = pneg %p163
      // Predicated region
      $region9: #{tpu_custom_call.1} parent=5 // pred_check
        _
      $region10: #{tpu_custom_call.1} parent=5 // pred_check_branch
        %166 = sbr.rel (%p163) target = $region12
      $region11: #{tpu_custom_call.1} parent=5 // pred_region
        %s167 = ssub.s32 %s12, 1
        // Predicated region
        $region13: #{tpu_custom_call.1} parent=11 // pred_check
          %p168 = pneg %p33
        $region14: #{tpu_custom_call.1} parent=11 // pred_check_branch
          %170 = sbr.rel (%p168) target = $region16
        $region15: #{tpu_custom_call.1} parent=11 // pred_region
          %s172 = ssub.s32 16, 16
          %173 = vsyncadd [#allocation3], %s172
          %s175 = sshll.u32 %s0, 4
          %s176 = int_to_ptr.vmem [resolvable:$true] %s175
          %178 = dma.vmem_to_smem %s176, 16, [#allocation2], [#allocation3]
        $region16: #{tpu_custom_call.1} parent=11 // pred_fallthru
          _
        // Predicated region
        $region17: #{tpu_custom_call.1} parent=11 // pred_check
          %p179 = pneg %p80
        $region18: #{tpu_custom_call.1} parent=11 // pred_check_branch
          %181 = sbr.rel (%p179) target = $region20
        $region19: #{tpu_custom_call.1} parent=11 // pred_region
          _
        $region20: #{tpu_custom_call.1} parent=11 // pred_fallthru
          _
        // Predicated region
        $region21: #{tpu_custom_call.1} parent=11 // pred_check
          %p182 = pneg %p127
        $region22: #{tpu_custom_call.1} parent=11 // pred_check_branch
          %184 = sbr.rel (%p182) target = $region24
        $region23: #{tpu_custom_call.1} parent=11 // pred_region
          _
        $region24: #{tpu_custom_call.1} parent=11 // pred_fallthru
          _
      $region12: #{tpu_custom_call.1} parent=5 // pred_fallthru
        _
      %p185 = scmp.lt.s32.totalorder %s12, 2
      // Predicated region
      $region25: #{tpu_custom_call.1} parent=5 // pred_check
        %p186 = pneg %p185
      $region26: #{tpu_custom_call.1} parent=5 // pred_check_branch
        %188 = sbr.rel (%p186) target = $region28
      $region27: #{tpu_custom_call.1} parent=5 // pred_region
        // Predicated region
        $region29: #{tpu_custom_call.1} parent=27 // pred_check
          %p189 = pneg %p53
        $region30: #{tpu_custom_call.1} parent=27 // pred_check_branch
          %191 = sbr.rel (%p189) target = $region32
        $region31: #{tpu_custom_call.1} parent=27 // pred_region
          %s192 = smul.u32 16, %s12
          %p193 = scmp.lt.s32.totalorder %s192, 31
          %s194 = scalar_select %p193, %s192, 31
          %s195 = smul.addr %s194, 2
          %s196 = smul.addr %s195, 4
          %s197 = scalar_lea.vmem %s1, %s196
          %s198 = smul.u32 16, %s12
        $region32: #{tpu_custom_call.1} parent=27 // pred_fallthru
          _
        // Predicated region
        $region33: #{tpu_custom_call.1} parent=27 // pred_check
          %p199 = pneg %p100
        $region34: #{tpu_custom_call.1} parent=27 // pred_check_branch
          %201 = sbr.rel (%p199) target = $region36
        $region35: #{tpu_custom_call.1} parent=27 // pred_region
          %s202 = smul.u32 16, %s12
          %p203 = scmp.lt.s32.totalorder %s202, 31
          %s204 = scalar_select %p203, %s202, 31
          %s205 = smul.addr %s204, 8
          %s206 = scalar_lea.vmem %s3, %s205
          %s207 = smul.u32 16, %s12
        $region36: #{tpu_custom_call.1} parent=27 // pred_fallthru
          _
      $region28: #{tpu_custom_call.1} parent=5 // pred_fallthru
        _
      %p208 = scmp.le.s32.totalorder 1, %s12
      %p209 = scmp.lt.s32.totalorder %s12, 3
      %p210 = pnand %p208, %p209
      %p211 = pneg %p210
      // Predicated region
      $region37: #{tpu_custom_call.1} parent=5 // pred_check
        _
      $region38: #{tpu_custom_call.1} parent=5 // pred_check_branch
        %213 = sbr.rel (%p210) target = $region40
      $region39: #{tpu_custom_call.1} parent=5 // pred_region
        %s214 = ssub.s32 %s12, 1
        // Predicated region
        $region41: #{tpu_custom_call.1} parent=39 // pred_check
          %p215 = pneg %p33
        $region42: #{tpu_custom_call.1} parent=39 // pred_check_branch
          %217 = sbr.rel (%p215) target = $region44
        $region43: #{tpu_custom_call.1} parent=39 // pred_region
          %218 = dma.done [#allocation3], 16
        $region44: #{tpu_custom_call.1} parent=39 // pred_fallthru
          _
        %219 = sfence
        %p220 = pneg %p33
        %p221 = pneg %p30
        %s222 = smul.u32 16, %s17
        %p223 = scmp.lt.s32.totalorder %s222, 31
        %s224 = scalar_select %p223, %s222, 31
        %s225 = smul.addr %s224, 2
        %s226 = smul.addr %s225, 4
        %s227 = scalar_lea.vmem %s1, %s226
        %p228 = pneg %p59
        %p229 = pneg %p56
        %p230 = pneg %p80
        %p231 = pneg %p77
        %s232 = smul.u32 16, %s17
        %p233 = scmp.lt.s32.totalorder %s232, 31
        %s234 = scalar_select %p233, %s232, 31
        %s235 = smul.addr %s234, 8
        %s236 = scalar_lea.vmem %s3, %s235
        %p237 = pneg %p106
        %p238 = pneg %p103
        %p239 = pneg %p127
        %p240 = pneg %p124
        %p241 = pneg %p153
        %p242 = pneg %p150
        %s243 = smul.u32 16, %s17
        %p244 = scmp.lt.s32.totalorder %s243, 31
        %s245 = scalar_select %p244, %s243, 31
        %s246 = smul.addr %s245, 8
        %s247 = scalar_lea.vmem %s5, %s246
        %s248 = smul.u32 16, %s17
        %p249 = scmp.lt.s32.totalorder %s248, 31
        %s250 = scalar_select %p249, %s248, 31
        %s251 = smul.addr %s250, 2
        %s252 = smul.addr %s251, 4
        %s253 = scalar_lea.vmem %s1, %s252
        %s254 = smul.u32 16, %s17
        %s255 = smul.u32 16, %s17
        %p256 = scmp.lt.s32.totalorder %s255, 31
        %s257 = scalar_select %p256, %s255, 31
        %s258 = smul.addr %s257, 8
        %s259 = scalar_lea.vmem %s3, %s258
        %s260 = smul.u32 16, %s17
        %s261 = smul.u32 16, %s17
        %p262 = scmp.lt.s32.totalorder %s261, 31
        %s263 = scalar_select %p262, %s261, 31
        %s264 = smul.addr %s263, 8
        %s265 = scalar_lea.vmem %s5, %s264
        %s266 = smul.u32 16, %s17
        %s268 = sld [smem:[#allocation2]]
        %s269 = sld [smem:[#allocation2 + $0x1]]
        %v270 = vld [vmem:[%s253] sm:$0xff]
        %v271 = vld [vmem:[%s253 + $0x8] sm:$0xff]
        %v272 = vld [vmem:[%s253 + $0x10] sm:$0xff]
        %v273 = vld [vmem:[%s253 + $0x18] sm:$0xff]
        %v274 = vld [vmem:[%s253 + $0x20] sm:$0xff]
        %v275 = vld [vmem:[%s253 + $0x28] sm:$0xff]
        %v276 = vld [vmem:[%s253 + $0x30] sm:$0xff]
        %v277 = vld [vmem:[%s253 + $0x38] sm:$0xff]
        %v278 = vld [vmem:[%s253 + $0x40] sm:$0xff]
        %v279 = vld [vmem:[%s253 + $0x48] sm:$0xff]
        %v280 = vld [vmem:[%s253 + $0x50] sm:$0xff]
        %v281 = vld [vmem:[%s253 + $0x58] sm:$0xff]
        %v282 = vld [vmem:[%s253 + $0x60] sm:$0xff]
        %v283 = vld [vmem:[%s253 + $0x68] sm:$0xff]
        %v284 = vld [vmem:[%s253 + $0x70] sm:$0xff]
        %v285 = vld [vmem:[%s253 + $0x78] sm:$0xff]
        %v286 = vld [vmem:[%s2] sm:$0xf]
        %v287 = vld [vmem:[%s2 + $0x4] sm:$0xf]
        %v288 = vld [vmem:[%s2 + $0x8] sm:$0xf]
        %v289 = vld [vmem:[%s2 + $0xc] sm:$0xf]
        %v290 = vld [vmem:[%s2 + $0x10] sm:$0xf]
        %v291 = vld [vmem:[%s2 + $0x14] sm:$0xf]
        %v292 = vld [vmem:[%s2 + $0x18] sm:$0xf]
        %v293 = vld [vmem:[%s2 + $0x1c] sm:$0xf]
        %v294 = vld [vmem:[%s2 + $0x20] sm:$0xf]
        %v295 = vld [vmem:[%s2 + $0x24] sm:$0xf]
        %v296 = vld [vmem:[%s2 + $0x28] sm:$0xf]
        %v297 = vld [vmem:[%s2 + $0x2c] sm:$0xf]
        %v298 = vld [vmem:[%s2 + $0x30] sm:$0xf]
        %v299 = vld [vmem:[%s2 + $0x34] sm:$0xf]
        %v300 = vld [vmem:[%s2 + $0x38] sm:$0xf]
        %v301 = vld [vmem:[%s2 + $0x3c] sm:$0xf]
        %v302 = vld [vmem:[%s2 + $0x40] sm:$0xf]
        %v303 = vld [vmem:[%s2 + $0x44] sm:$0xf]
        %v304 = vld [vmem:[%s2 + $0x48] sm:$0xf]
        %v305 = vld [vmem:[%s2 + $0x4c] sm:$0xf]
        %v306 = vld [vmem:[%s2 + $0x50] sm:$0xf]
        %v307 = vld [vmem:[%s2 + $0x54] sm:$0xf]
        %v308 = vld [vmem:[%s2 + $0x58] sm:$0xf]
        %v309 = vld [vmem:[%s2 + $0x5c] sm:$0xf]
        %v310 = vld [vmem:[%s2 + $0x60] sm:$0xf]
        %v311 = vld [vmem:[%s2 + $0x64] sm:$0xf]
        %v312 = vld [vmem:[%s2 + $0x68] sm:$0xf]
        %v313 = vld [vmem:[%s2 + $0x6c] sm:$0xf]
        %v314 = vld [vmem:[%s2 + $0x70] sm:$0xf]
        %v315 = vld [vmem:[%s2 + $0x74] sm:$0xf]
        %v316 = vld [vmem:[%s2 + $0x78] sm:$0xf]
        %v317 = vld [vmem:[%s2 + $0x7c] sm:$0xf]
        %v334 = vunpack.c.l.b16 %v270
        %v335 = vunpack.c.h.b16 %v270
        %v336 = vunpack.c.l.b16 %v271
        %v337 = vunpack.c.h.b16 %v271
        %v338 = vunpack.c.l.b16 %v272
        %v339 = vunpack.c.h.b16 %v272
        %v340 = vunpack.c.l.b16 %v273
        %v341 = vunpack.c.h.b16 %v273
        %v342 = vunpack.c.l.b16 %v274
        %v343 = vunpack.c.h.b16 %v274
        %v344 = vunpack.c.l.b16 %v275
        %v345 = vunpack.c.h.b16 %v275
        %v346 = vunpack.c.l.b16 %v276
        %v347 = vunpack.c.h.b16 %v276
        %v348 = vunpack.c.l.b16 %v277
        %v349 = vunpack.c.h.b16 %v277
        %v350 = vunpack.c.l.b16 %v278
        %v351 = vunpack.c.h.b16 %v278
        %v352 = vunpack.c.l.b16 %v279
        %v353 = vunpack.c.h.b16 %v279
        %v354 = vunpack.c.l.b16 %v280
        %v355 = vunpack.c.h.b16 %v280
        %v356 = vunpack.c.l.b16 %v281
        %v357 = vunpack.c.h.b16 %v281
        %v358 = vunpack.c.l.b16 %v282
        %v359 = vunpack.c.h.b16 %v282
        %v360 = vunpack.c.l.b16 %v283
        %v361 = vunpack.c.h.b16 %v283
        %v362 = vunpack.c.l.b16 %v284
        %v363 = vunpack.c.h.b16 %v284
        %v364 = vunpack.c.l.b16 %v285
        %v365 = vunpack.c.h.b16 %v285
        %v366 = vpack.c.b16 %v336, %v334
        %v367 = vpack.c.b16 %v337, %v335
        %v368 = vpack.c.b16 %v340, %v338
        %v369 = vpack.c.b16 %v341, %v339
        %v370 = vpack.c.b16 %v344, %v342
        %v371 = vpack.c.b16 %v345, %v343
        %v372 = vpack.c.b16 %v348, %v346
        %v373 = vpack.c.b16 %v349, %v347
        %v374 = vpack.c.b16 %v352, %v350
        %v375 = vpack.c.b16 %v353, %v351
        %v376 = vpack.c.b16 %v356, %v354
        %v377 = vpack.c.b16 %v357, %v355
        %v378 = vpack.c.b16 %v360, %v358
        %v379 = vpack.c.b16 %v361, %v359
        %v380 = vpack.c.b16 %v364, %v362
        %v381 = vpack.c.b16 %v365, %v363
        %v430 = vunpack.c.l.b16 %v286
        %v431 = vunpack.c.l.b16 %v287
        %v432 = vunpack.c.l.b16 %v288
        %v433 = vunpack.c.l.b16 %v289
        %v434 = vunpack.c.l.b16 %v290
        %v435 = vunpack.c.l.b16 %v291
        %v436 = vunpack.c.l.b16 %v292
        %v437 = vunpack.c.l.b16 %v293
        %v438 = vunpack.c.l.b16 %v294
        %v439 = vunpack.c.l.b16 %v295
        %v440 = vunpack.c.l.b16 %v296
        %v441 = vunpack.c.l.b16 %v297
        %v442 = vunpack.c.l.b16 %v298
        %v443 = vunpack.c.l.b16 %v299
        %v444 = vunpack.c.l.b16 %v300
        %v445 = vunpack.c.l.b16 %v301
        %v446 = vunpack.c.l.b16 %v302
        %v447 = vunpack.c.l.b16 %v303
        %v448 = vunpack.c.l.b16 %v304
        %v449 = vunpack.c.l.b16 %v305
        %v450 = vunpack.c.l.b16 %v306
        %v451 = vunpack.c.l.b16 %v307
        %v452 = vunpack.c.l.b16 %v308
        %v453 = vunpack.c.l.b16 %v309
        %v454 = vunpack.c.l.b16 %v310
        %v455 = vunpack.c.l.b16 %v311
        %v456 = vunpack.c.l.b16 %v312
        %v457 = vunpack.c.l.b16 %v313
        %v458 = vunpack.c.l.b16 %v314
        %v459 = vunpack.c.l.b16 %v315
        %v460 = vunpack.c.l.b16 %v316
        %v461 = vunpack.c.l.b16 %v317
        %v462 = vpack.c.b16 %v431, %v430
        %v463 = vpack.c.b16 %v433, %v432
        %v464 = vpack.c.b16 %v435, %v434
        %v465 = vpack.c.b16 %v437, %v436
        %v466 = vpack.c.b16 %v439, %v438
        %v467 = vpack.c.b16 %v441, %v440
        %v468 = vpack.c.b16 %v443, %v442
        %v469 = vpack.c.b16 %v445, %v444
        %v470 = vpack.c.b16 %v447, %v446
        %v471 = vpack.c.b16 %v449, %v448
        %v472 = vpack.c.b16 %v451, %v450
        %v473 = vpack.c.b16 %v453, %v452
        %v474 = vpack.c.b16 %v455, %v454
        %v475 = vpack.c.b16 %v457, %v456
        %v476 = vpack.c.b16 %v459, %v458
        %v477 = vpack.c.b16 %v461, %v460
        %494 = vmatprep.subr.bf16.mxu0 0
        %495 = vmatpush1.bf16.msra.mxu0 %v462
        %496 = vmatprep.subr.bf16.mxu0 0
        %497 = vmatpush1.bf16.msra.mxu0 %v463
        %498 = vmatprep.subr.bf16.mxu0 0
        %499 = vmatpush1.bf16.msra.mxu0 %v464
        %500 = vmatprep.subr.bf16.mxu0 0
        %501 = vmatpush1.bf16.msra.mxu0 %v465
        %502 = vmatprep.subr.bf16.mxu0 0
        %503 = vmatpush1.bf16.msra.mxu0 %v466
        %504 = vmatprep.subr.bf16.mxu0 0
        %505 = vmatpush1.bf16.msra.mxu0 %v467
        %506 = vmatprep.subr.bf16.mxu0 0
        %507 = vmatpush1.bf16.msra.mxu0 %v468
        %508 = vmatprep.subr.bf16.mxu0 0
        %509 = vmatpush1.bf16.msra.mxu0 %v469
        %510 = vmatprep.subr.bf16.mxu0 0
        %511 = vmatpush1.bf16.msra.mxu0 %v470
        %512 = vmatprep.subr.bf16.mxu0 0
        %513 = vmatpush1.bf16.msra.mxu0 %v471
        %514 = vmatprep.subr.bf16.mxu0 0
        %515 = vmatpush1.bf16.msra.mxu0 %v472
        %516 = vmatprep.subr.bf16.mxu0 0
        %517 = vmatpush1.bf16.msra.mxu0 %v473
        %518 = vmatprep.subr.bf16.mxu0 0
        %519 = vmatpush1.bf16.msra.mxu0 %v474
        %520 = vmatprep.subr.bf16.mxu0 0
        %521 = vmatpush1.bf16.msra.mxu0 %v475
        %522 = vmatprep.subr.bf16.mxu0 0
        %523 = vmatpush1.bf16.msra.mxu0 %v476
        %524 = vmatprep.subr.bf16.mxu0 0
        %525 = vmatpush1.bf16.msra.mxu0 %v477
        %526 = vmatprep.mubr.bf16.mxu0 %v367
        %527 = vmatmul.mubr.bf16.gmra.mrb[0].mxu0 %v366
        %v528 = vpop.f32.mrb[0].mxu0
        %v529 = vadd.f32 0.0, %v528
        %v530 = vpop.f32.mrb[0].mxu0
        %v531 = vpop.f32.mrb[0].mxu0
        %v532 = vadd.f32 0.0, %v531
        %v533 = vpop.f32.mrb[0].mxu0
        %534 = vmatprep.mubr.bf16.mxu0 %v369
        %535 = vmatmul.mubr.bf16.gmra.mrb[0].mxu0 %v368
        %v536 = vpop.f32.mrb[0].mxu0
        %v537 = vadd.f32 0.0, %v536
        %v538 = vpop.f32.mrb[0].mxu0
        %v539 = vpop.f32.mrb[0].mxu0
        %v540 = vadd.f32 0.0, %v539
        %v541 = vpop.f32.mrb[0].mxu0
        %542 = vmatprep.mubr.bf16.mxu0 %v371
        %543 = vmatmul.mubr.bf16.gmra.mrb[0].mxu0 %v370
        %v544 = vpop.f32.mrb[0].mxu0
        %v545 = vadd.f32 0.0, %v544
        %v546 = vpop.f32.mrb[0].mxu0
        %v547 = vpop.f32.mrb[0].mxu0
        %v548 = vadd.f32 0.0, %v547
        %v549 = vpop.f32.mrb[0].mxu0
        %550 = vmatprep.mubr.bf16.mxu0 %v373
        %551 = vmatmul.mubr.bf16.gmra.mrb[0].mxu0 %v372
        %v552 = vpop.f32.mrb[0].mxu0
        %v553 = vadd.f32 0.0, %v552
        %v554 = vpop.f32.mrb[0].mxu0
        %v555 = vpop.f32.mrb[0].mxu0
        %v556 = vadd.f32 0.0, %v555
        %v557 = vpop.f32.mrb[0].mxu0
        %558 = vmatprep.mubr.bf16.mxu0 %v375
        %559 = vmatmul.mubr.bf16.gmra.mrb[0].mxu0 %v374
        %v560 = vpop.f32.mrb[0].mxu0
        %v561 = vadd.f32 0.0, %v560
        %v562 = vpop.f32.mrb[0].mxu0
        %v563 = vpop.f32.mrb[0].mxu0
        %v564 = vadd.f32 0.0, %v563
        %v565 = vpop.f32.mrb[0].mxu0
        %566 = vmatprep.mubr.bf16.mxu0 %v377
        %567 = vmatmul.mubr.bf16.gmra.mrb[0].mxu0 %v376
        %v568 = vpop.f32.mrb[0].mxu0
        %v569 = vadd.f32 0.0, %v568
        %v570 = vpop.f32.mrb[0].mxu0
        %v571 = vpop.f32.mrb[0].mxu0
        %v572 = vadd.f32 0.0, %v571
        %v573 = vpop.f32.mrb[0].mxu0
        %574 = vmatprep.mubr.bf16.mxu0 %v379
        %575 = vmatmul.mubr.bf16.gmra.mrb[0].mxu0 %v378
        %v576 = vpop.f32.mrb[0].mxu0
        %v577 = vadd.f32 0.0, %v576
        %v578 = vpop.f32.mrb[0].mxu0
        %v579 = vpop.f32.mrb[0].mxu0
        %v580 = vadd.f32 0.0, %v579
        %v581 = vpop.f32.mrb[0].mxu0
        %582 = vmatprep.mubr.bf16.mxu0 %v381
        %583 = vmatmul.mubr.bf16.gmra.mrb[0].mxu0 %v380
        %v584 = vpop.f32.mrb[0].mxu0
        %v585 = vadd.f32 0.0, %v584
        %v586 = vpop.f32.mrb[0].mxu0
        %v587 = vpop.f32.mrb[0].mxu0
        %v588 = vadd.f32 0.0, %v587
        %v589 = vpop.f32.mrb[0].mxu0
        %590 = vdwg.mxu0
        %v591 = vld [vmem:[%s259] sm:$0xff]
        %v592 = vld [vmem:[%s259 + $0x8] sm:$0xff]
        %v593 = vld [vmem:[%s259 + $0x10] sm:$0xff]
        %v594 = vld [vmem:[%s259 + $0x18] sm:$0xff]
        %v595 = vld [vmem:[%s259 + $0x20] sm:$0xff]
        %v596 = vld [vmem:[%s259 + $0x28] sm:$0xff]
        %v597 = vld [vmem:[%s259 + $0x30] sm:$0xff]
        %v598 = vld [vmem:[%s259 + $0x38] sm:$0xff]
        %v599 = vld [vmem:[%s259 + $0x40] sm:$0xff]
        %v600 = vld [vmem:[%s259 + $0x48] sm:$0xff]
        %v601 = vld [vmem:[%s259 + $0x50] sm:$0xff]
        %v602 = vld [vmem:[%s259 + $0x58] sm:$0xff]
        %v603 = vld [vmem:[%s259 + $0x60] sm:$0xff]
        %v604 = vld [vmem:[%s259 + $0x68] sm:$0xff]
        %v605 = vld [vmem:[%s259 + $0x70] sm:$0xff]
        %v606 = vld [vmem:[%s259 + $0x78] sm:$0xff]
        %v607 = vld [vmem:[%s4] sm:$0xf]
        %v608 = vld [vmem:[%s4 + $0x4] sm:$0xf]
        %v609 = vld [vmem:[%s4 + $0x8] sm:$0xf]
        %v610 = vld [vmem:[%s4 + $0xc] sm:$0xf]
        %s611 = ssub.f32 1.0, %s268
        %v612 = vstv %s611
        %v613 = vmul.f32 %v612, %v529
        %v614 = vmul.f32 %v612, %v532
        %v615 = vmul.f32 %v612, %v537
        %v616 = vmul.f32 %v612, %v540
        %v617 = vmul.f32 %v612, %v545
        %v618 = vmul.f32 %v612, %v548
        %v619 = vmul.f32 %v612, %v553
        %v620 = vmul.f32 %v612, %v556
        %v621 = vmul.f32 %v612, %v561
        %v622 = vmul.f32 %v612, %v564
        %v623 = vmul.f32 %v612, %v569
        %v624 = vmul.f32 %v612, %v572
        %v625 = vmul.f32 %v612, %v577
        %v626 = vmul.f32 %v612, %v580
        %v627 = vmul.f32 %v612, %v585
        %v628 = vmul.f32 %v612, %v588
        %v629 = vstv %s268
        %v630 = vmul.f32 %v629, %v591
        %v631 = vmul.f32 %v629, %v592
        %v632 = vmul.f32 %v629, %v593
        %v633 = vmul.f32 %v629, %v594
        %v634 = vmul.f32 %v629, %v595
        %v635 = vmul.f32 %v629, %v596
        %v636 = vmul.f32 %v629, %v597
        %v637 = vmul.f32 %v629, %v598
        %v638 = vmul.f32 %v629, %v599
        %v639 = vmul.f32 %v629, %v600
        %v640 = vmul.f32 %v629, %v601
        %v641 = vmul.f32 %v629, %v602
        %v642 = vmul.f32 %v629, %v603
        %v643 = vmul.f32 %v629, %v604
        %v644 = vmul.f32 %v629, %v605
        %v645 = vmul.f32 %v629, %v606
        %v646 = vadd.f32 %v613, %v630
        %v647 = vadd.f32 %v614, %v631
        %v648 = vadd.f32 %v615, %v632
        %v649 = vadd.f32 %v616, %v633
        %v650 = vadd.f32 %v617, %v634
        %v651 = vadd.f32 %v618, %v635
        %v652 = vadd.f32 %v619, %v636
        %v653 = vadd.f32 %v620, %v637
        %v654 = vadd.f32 %v621, %v638
        %v655 = vadd.f32 %v622, %v639
        %v656 = vadd.f32 %v623, %v640
        %v657 = vadd.f32 %v624, %v641
        %v658 = vadd.f32 %v625, %v642
        %v659 = vadd.f32 %v626, %v643
        %v660 = vadd.f32 %v627, %v644
        %v661 = vadd.f32 %v628, %v645
        %s662 = ssub.f32 1.0, %s269
        %v663 = vstv %s662
        %v664 = vmul.f32 %v663, %v646
        %v665 = vmul.f32 %v663, %v647
        %v666 = vmul.f32 %v663, %v648
        %v667 = vmul.f32 %v663, %v649
        %v668 = vmul.f32 %v663, %v650
        %v669 = vmul.f32 %v663, %v651
        %v670 = vmul.f32 %v663, %v652
        %v671 = vmul.f32 %v663, %v653
        %v672 = vmul.f32 %v663, %v654
        %v673 = vmul.f32 %v663, %v655
        %v674 = vmul.f32 %v663, %v656
        %v675 = vmul.f32 %v663, %v657
        %v676 = vmul.f32 %v663, %v658
        %v677 = vmul.f32 %v663, %v659
        %v678 = vmul.f32 %v663, %v660
        %v679 = vmul.f32 %v663, %v661
        %v680 = vpack.c.bf16 %v647, %v646
        %v681 = vpack.c.bf16 %v649, %v648
        %v682 = vpack.c.bf16 %v651, %v650
        %v683 = vpack.c.bf16 %v653, %v652
        %v684 = vpack.c.bf16 %v655, %v654
        %v685 = vpack.c.bf16 %v657, %v656
        %v686 = vpack.c.bf16 %v659, %v658
        %v687 = vpack.c.bf16 %v661, %v660
        %v692 = vunpack.c.l.b16 %v607
        %v693 = vunpack.c.l.b16 %v608
        %v694 = vunpack.c.l.b16 %v609
        %v695 = vunpack.c.l.b16 %v610
        %v696 = vpack.c.b16 %v693, %v692
        %v697 = vpack.c.b16 %v695, %v694
        %vm700 = vcmask 261120
        %v702 = vsel %vm700, %v680, 0
        %v705 = vsel %vm700, %v681, 0
        %v708 = vsel %vm700, %v682, 0
        %v711 = vsel %vm700, %v683, 0
        %v714 = vsel %vm700, %v684, 0
        %v717 = vsel %vm700, %v685, 0
        %v720 = vsel %vm700, %v686, 0
        %v723 = vsel %vm700, %v687, 0
        %725 = vmatprep.subr.bf16.mxu0 0
        %726 = vmatpush1.bf16.msra.mxu0 %v696
        %727 = vmatprep.subr.bf16.mxu0 0
        %728 = vmatpush1.bf16.msra.mxu0 %v697
        %729 = vmatprep.subr.bf16.mxu0 0
        %730 = vmatpush1.bf16.msra.mxu0 0
        %731 = vmatprep.subr.bf16.mxu0 0
        %732 = vmatpush1.bf16.msra.mxu0 0
        %733 = vmatprep.subr.bf16.mxu0 0
        %734 = vmatpush1.bf16.msra.mxu0 0
        %735 = vmatprep.subr.bf16.mxu0 0
        %736 = vmatpush1.bf16.msra.mxu0 0
        %737 = vmatprep.subr.bf16.mxu0 0
        %738 = vmatpush1.bf16.msra.mxu0 0
        %739 = vmatprep.subr.bf16.mxu0 0
        %740 = vmatpush1.bf16.msra.mxu0 0
        %741 = vmatprep.subr.bf16.mxu0 0
        %742 = vmatpush1.bf16.msra.mxu0 0
        %743 = vmatprep.subr.bf16.mxu0 0
        %744 = vmatpush1.bf16.msra.mxu0 0
        %745 = vmatprep.subr.bf16.mxu0 0
        %746 = vmatpush1.bf16.msra.mxu0 0
        %747 = vmatprep.subr.bf16.mxu0 0
        %748 = vmatpush1.bf16.msra.mxu0 0
        %749 = vmatprep.subr.bf16.mxu0 0
        %750 = vmatpush1.bf16.msra.mxu0 0
        %751 = vmatprep.subr.bf16.mxu0 0
        %752 = vmatpush1.bf16.msra.mxu0 0
        %753 = vmatprep.subr.bf16.mxu0 0
        %754 = vmatpush1.bf16.msra.mxu0 0
        %755 = vmatprep.subr.bf16.mxu0 0
        %756 = vmatpush1.bf16.msra.mxu0 0
        %757 = vmatprep.mubr.bf16.mxu0 0
        %758 = vmatmul.mubr.bf16.gmra.mrb[0].mxu0 %v702
        %v759 = vpop.f32.mrb[0].mxu0
        %v760 = vadd.f32 0.0, %v759
        %v761 = vpop.f32.mrb[0].mxu0
        %v762 = vpop.f32.mrb[0].mxu0
        %v763 = vadd.f32 0.0, %v762
        %v764 = vpop.f32.mrb[0].mxu0
        %765 = vmatprep.mubr.bf16.mxu0 0
        %766 = vmatmul.mubr.bf16.gmra.mrb[0].mxu0 %v705
        %v767 = vpop.f32.mrb[0].mxu0
        %v768 = vadd.f32 0.0, %v767
        %v769 = vpop.f32.mrb[0].mxu0
        %v770 = vpop.f32.mrb[0].mxu0
        %v771 = vadd.f32 0.0, %v770
        %v772 = vpop.f32.mrb[0].mxu0
        %773 = vmatprep.mubr.bf16.mxu0 0
        %774 = vmatmul.mubr.bf16.gmra.mrb[0].mxu0 %v708
        %v775 = vpop.f32.mrb[0].mxu0
        %v776 = vadd.f32 0.0, %v775
        %v777 = vpop.f32.mrb[0].mxu0
        %v778 = vpop.f32.mrb[0].mxu0
        %v779 = vadd.f32 0.0, %v778
        %v780 = vpop.f32.mrb[0].mxu0
        %781 = vmatprep.mubr.bf16.mxu0 0
        %782 = vmatmul.mubr.bf16.gmra.mrb[0].mxu0 %v711
        %v783 = vpop.f32.mrb[0].mxu0
        %v784 = vadd.f32 0.0, %v783
        %v785 = vpop.f32.mrb[0].mxu0
        %v786 = vpop.f32.mrb[0].mxu0
        %v787 = vadd.f32 0.0, %v786
        %v788 = vpop.f32.mrb[0].mxu0
        %789 = vmatprep.mubr.bf16.mxu0 0
        %790 = vmatmul.mubr.bf16.gmra.mrb[0].mxu0 %v714
        %v791 = vpop.f32.mrb[0].mxu0
        %v792 = vadd.f32 0.0, %v791
        %v793 = vpop.f32.mrb[0].mxu0
        %v794 = vpop.f32.mrb[0].mxu0
        %v795 = vadd.f32 0.0, %v794
        %v796 = vpop.f32.mrb[0].mxu0
        %797 = vmatprep.mubr.bf16.mxu0 0
        %798 = vmatmul.mubr.bf16.gmra.mrb[0].mxu0 %v717
        %v799 = vpop.f32.mrb[0].mxu0
        %v800 = vadd.f32 0.0, %v799
        %v801 = vpop.f32.mrb[0].mxu0
        %v802 = vpop.f32.mrb[0].mxu0
        %v803 = vadd.f32 0.0, %v802
        %v804 = vpop.f32.mrb[0].mxu0
        %805 = vmatprep.mubr.bf16.mxu0 0
        %806 = vmatmul.mubr.bf16.gmra.mrb[0].mxu0 %v720
        %v807 = vpop.f32.mrb[0].mxu0
        %v808 = vadd.f32 0.0, %v807
        %v809 = vpop.f32.mrb[0].mxu0
        %v810 = vpop.f32.mrb[0].mxu0
        %v811 = vadd.f32 0.0, %v810
        %v812 = vpop.f32.mrb[0].mxu0
        %813 = vmatprep.mubr.bf16.mxu0 0
        %814 = vmatmul.mubr.bf16.gmra.mrb[0].mxu0 %v723
        %v815 = vpop.f32.mrb[0].mxu0
        %v816 = vadd.f32 0.0, %v815
        %v817 = vpop.f32.mrb[0].mxu0
        %v818 = vpop.f32.mrb[0].mxu0
        %v819 = vadd.f32 0.0, %v818
        %v820 = vpop.f32.mrb[0].mxu0
        %821 = vdwg.mxu0
        %v822 = vstv %s269
        %v823 = vmul.f32 %v822, %v760
        %v824 = vmul.f32 %v822, %v763
        %v825 = vmul.f32 %v822, %v768
        %v826 = vmul.f32 %v822, %v771
        %v827 = vmul.f32 %v822, %v776
        %v828 = vmul.f32 %v822, %v779
        %v829 = vmul.f32 %v822, %v784
        %v830 = vmul.f32 %v822, %v787
        %v831 = vmul.f32 %v822, %v792
        %v832 = vmul.f32 %v822, %v795
        %v833 = vmul.f32 %v822, %v800
        %v834 = vmul.f32 %v822, %v803
        %v835 = vmul.f32 %v822, %v808
        %v836 = vmul.f32 %v822, %v811
        %v837 = vmul.f32 %v822, %v816
        %v838 = vmul.f32 %v822, %v819
        %v839 = vadd.f32 %v664, %v823
        %v840 = vadd.f32 %v665, %v824
        %v841 = vadd.f32 %v666, %v825
        %v842 = vadd.f32 %v667, %v826
        %v843 = vadd.f32 %v668, %v827
        %v844 = vadd.f32 %v669, %v828
        %v845 = vadd.f32 %v670, %v829
        %v846 = vadd.f32 %v671, %v830
        %v847 = vadd.f32 %v672, %v831
        %v848 = vadd.f32 %v673, %v832
        %v849 = vadd.f32 %v674, %v833
        %v850 = vadd.f32 %v675, %v834
        %v851 = vadd.f32 %v676, %v835
        %v852 = vadd.f32 %v677, %v836
        %v853 = vadd.f32 %v678, %v837
        %v854 = vadd.f32 %v679, %v838
        %855 = vst.msk [vmem:[%s265] sm:$0xff] %vm700, %v839
        %856 = vst.msk [vmem:[%s265 + $0x8] sm:$0xff] %vm700, %v840
        %857 = vst.msk [vmem:[%s265 + $0x10] sm:$0xff] %vm700, %v841
        %858 = vst.msk [vmem:[%s265 + $0x18] sm:$0xff] %vm700, %v842
        %859 = vst.msk [vmem:[%s265 + $0x20] sm:$0xff] %vm700, %v843
        %860 = vst.msk [vmem:[%s265 + $0x28] sm:$0xff] %vm700, %v844
        %861 = vst.msk [vmem:[%s265 + $0x30] sm:$0xff] %vm700, %v845
        %862 = vst.msk [vmem:[%s265 + $0x38] sm:$0xff] %vm700, %v846
        %863 = vst.msk [vmem:[%s265 + $0x40] sm:$0xff] %vm700, %v847
        %864 = vst.msk [vmem:[%s265 + $0x48] sm:$0xff] %vm700, %v848
        %865 = vst.msk [vmem:[%s265 + $0x50] sm:$0xff] %vm700, %v849
        %866 = vst.msk [vmem:[%s265 + $0x58] sm:$0xff] %vm700, %v850
        %867 = vst.msk [vmem:[%s265 + $0x60] sm:$0xff] %vm700, %v851
        %868 = vst.msk [vmem:[%s265 + $0x68] sm:$0xff] %vm700, %v852
        %869 = vst.msk [vmem:[%s265 + $0x70] sm:$0xff] %vm700, %v853
        %870 = vst.msk [vmem:[%s265 + $0x78] sm:$0xff] %vm700, %v854
        %s871 = smul.u32 16, %s17
        %p872 = scmp.lt.s32.totalorder %s871, 31
        %s873 = scalar_select %p872, %s871, 31
        %s874 = smul.addr %s873, 8
        %s875 = scalar_lea.vmem %s5, %s874
        // Predicated region
        $region45: #{tpu_custom_call.1} parent=39 // pred_check
          %p876 = pneg %p150
        $region46: #{tpu_custom_call.1} parent=39 // pred_check_branch
          %878 = sbr.rel (%p876) target = $region48
        $region47: #{tpu_custom_call.1} parent=39 // pred_region
          %s879 = smul.u32 16, %s17
        $region48: #{tpu_custom_call.1} parent=39 // pred_fallthru
          _
      $region40: #{tpu_custom_call.1} parent=5 // pred_fallthru
        _
      %p880 = scmp.le.s32.totalorder 2, %s12
      // Predicated region
      $region49: #{tpu_custom_call.1} parent=5 // pred_check
        %p881 = pneg %p880
      $region50: #{tpu_custom_call.1} parent=5 // pred_check_branch
        %883 = sbr.rel (%p881) target = $region52
      $region51: #{tpu_custom_call.1} parent=5 // pred_region
        %s884 = ssub.s32 %s12, 2
        // Predicated region
        $region53: #{tpu_custom_call.1} parent=51 // pred_check
          %p885 = pneg %p156
        $region54: #{tpu_custom_call.1} parent=51 // pred_check_branch
          %887 = sbr.rel (%p885) target = $region56
        $region55: #{tpu_custom_call.1} parent=51 // pred_region
          %s888 = smul.u32 16, %s18
          %p889 = scmp.lt.s32.totalorder %s888, 31
          %s890 = scalar_select %p889, %s888, 31
          %s891 = smul.addr %s890, 8
          %s892 = scalar_lea.vmem %s5, %s891
        $region56: #{tpu_custom_call.1} parent=51 // pred_fallthru
          _
      $region52: #{tpu_custom_call.1} parent=5 // pred_fallthru
        _
    $region6: #{tpu_custom_call.1} parent=1 // loop_footer
      %s16 = sadd.s32 1, %s12
    $region7: #{tpu_custom_call.1} parent=1 // loop_footer_branch
      %11 = sbr.rel target = $region3
    $region8: #{tpu_custom_call.1} parent=1 // loop_exit
      _
    %893 = vsyncpa [#allocation3], 1
    %s894 = scalar_lea.sflag [#allocation3], 1
    %895 = vsyncpa %s894, 1

</llo_original>
